<compile_context>
chip_gen: v5e
topology: v5e:2x2
jax: 0.10.0
libtpu: 0.0.40
codegen_flags: <defaults>
</compile_context>

<pallas_src>
import math
import jax
import jax.numpy as jnp
from jax.experimental import pallas as pl
from jax.experimental.pallas import tpu as pltpu


# ----------------------------------------------------------------------------
# Kernel 1: fused LayerNorm + QKV projection (LoRA deltas folded into W_q/W_v)
# ----------------------------------------------------------------------------
def _ln_qkv_kernel(t_ref, g_ref, beta_ref,
                   wq_ref, wk_ref, wv_ref,
                   bq_ref, bk_ref, bv_ref,
                   oq_ref, ok_ref, ov_ref):
    # t_ref:     (1, N, C)  f32 tokens (pre-norm residual stream)
    # g/beta:    (1, C)     f32 layernorm gamma / beta
    # w*_ref:    (C, C)     bf16 compute-layout weights (LoRA folded into q/v)
    # b*_ref:    (1, C)     f32 biases
    # o*_ref:    (1, N, C)  f32 outputs (lane-dense full-width stores)
    x = t_ref[0]                                              # (N, C) f32

    # LayerNorm (eps=1e-6, timm ViT default) on the VPU/EUP.
    mu = jnp.mean(x, axis=-1, keepdims=True)
    var = jnp.mean(jnp.square(x - mu), axis=-1, keepdims=True)
    xn = (x - mu) * jax.lax.rsqrt(var + 1e-6) * g_ref[...] + beta_ref[...]
    xb = xn.astype(jnp.bfloat16)                              # MXU operand

    def proj(w_ref, b_ref):
        acc = jnp.dot(xb, w_ref[...], preferred_element_type=jnp.float32)
        return acc + b_ref[...]                               # bias add in f32

    oq_ref[0] = proj(wq_ref, bq_ref)
    ok_ref[0] = proj(wk_ref, bk_ref)
    ov_ref[0] = proj(wv_ref, bv_ref)


def lora_ln_qkv(tokens, ln_g, ln_b, w_q_eff, w_k, w_v_eff, b_q, b_k, b_v):
    """tokens: (B, N, C) f32. Weights already in compute layout (C, C) with
    the LoRA low-rank deltas folded into w_q_eff / w_v_eff. Biases (C,) f32.
    Applies LayerNorm(tokens) then the qkv projection.
    Returns (q, k, v), each (B, N, C) float32."""
    B, N, C = tokens.shape
    g = ln_g.reshape(1, C).astype(jnp.float32)
    beta = ln_b.reshape(1, C).astype(jnp.float32)
    wq = w_q_eff.astype(jnp.bfloat16)
    wk = w_k.astype(jnp.bfloat16)
    wv = w_v_eff.astype(jnp.bfloat16)
    bq = b_q.reshape(1, C).astype(jnp.float32)
    bk = b_k.reshape(1, C).astype(jnp.float32)
    bv = b_v.reshape(1, C).astype(jnp.float32)

    tok_spec = pl.BlockSpec((1, N, C), lambda b: (b, 0, 0))
    vec_spec = pl.BlockSpec((1, C), lambda b: (0, 0))
    w_spec = pl.BlockSpec((C, C), lambda b: (0, 0))
    out_sd = jax.ShapeDtypeStruct((B, N, C), jnp.float32)

    return pl.pallas_call(
        _ln_qkv_kernel,
        out_shape=(out_sd, out_sd, out_sd),
        grid=(B,),
        in_specs=[tok_spec, vec_spec, vec_spec,
                  w_spec, w_spec, w_spec,
                  vec_spec, vec_spec, vec_spec],
        out_specs=(tok_spec, tok_spec, tok_spec),
        compiler_params=pltpu.CompilerParams(
            dimension_semantics=("parallel",)),
    )(tokens.astype(jnp.float32), g, beta, wq, wk, wv, bq, bk, bv)


# ----------------------------------------------------------------------------
# Kernel 2: spatial mean-pool + linear task head, whole batch in one step
# ----------------------------------------------------------------------------
def _pool_head_kernel(t_ref, w_ref, b_ref, o_ref):
    # t_ref: (B, HW, C) f32 patch tokens; w_ref: (C, nc) bf16; b_ref: (1, nc)
    pooled = jnp.mean(t_ref[...], axis=1)                     # (B, C) f32
    o_ref[...] = jnp.dot(pooled.astype(jnp.bfloat16), w_ref[...],
                         preferred_element_type=jnp.float32) + b_ref[...]


def pool_and_head(patch_tokens, w_head_t, b_head):
    """patch_tokens: (B, HW, C). Head weight already in compute layout
    (C, num_classes). Equivalent to NCHW x.mean(-1).mean(-1) then Linear."""
    B, HW, C = patch_tokens.shape
    nc = w_head_t.shape[1]
    return pl.pallas_call(
        _pool_head_kernel,
        out_shape=jax.ShapeDtypeStruct((B, nc), jnp.float32),
    )(patch_tokens.astype(jnp.float32),
      w_head_t.astype(jnp.bfloat16),
      b_head.reshape(1, nc).astype(jnp.float32))


# ----------------------------------------------------------------------------
# One-time parameter preparation: transpose / split / fold LoRA deltas
# ----------------------------------------------------------------------------
def prepare_params(raw):
    """Convert torch-layout weights to TPU compute layout once.
    Folds the rank-r LoRA adapters into the effective q / v projection weights
    (exact math: x@W.T + (x@A.T)@B.T == x@(W.T + A.T@B.T)). If the LoRA
    adapters are being trained, re-run this fold per step -- it costs only two
    (C, r) x (r, C) matmuls."""
    hp = jax.lax.Precision.HIGHEST
    C = raw["w_qkv"].shape[1]
    w_t = raw["w_qkv"].T.astype(jnp.float32)                  # (C, 3C)
    dw_q = jnp.dot(raw["a_q"].T, raw["b_q"].T, precision=hp)  # (C, C)
    dw_v = jnp.dot(raw["a_v"].T, raw["b_v"].T, precision=hp)  # (C, C)

    p = {k: v for k, v in raw.items()
         if k not in ("w_qkv", "b_qkv", "a_q", "b_q", "a_v", "b_v", "w_head")}
    p["w_q_eff"] = w_t[:, :C] + dw_q
    p["w_k"] = w_t[:, C:2 * C]
    p["w_v_eff"] = w_t[:, 2 * C:] + dw_v
    p["b_q"] = raw["b_qkv"][:C]
    p["b_k"] = raw["b_qkv"][C:2 * C]
    p["b_v"] = raw["b_qkv"][2 * C:]
    p["w_head_t"] = raw["w_head"].T                           # (C, num_classes)
    return p


# ----------------------------------------------------------------------------
# Glue: minimal ViT "backbone" around the fused LN+LoRA-qkv kernel
# ----------------------------------------------------------------------------
def layer_norm(x, g, b, eps=1e-6):
    mu = jnp.mean(x, axis=-1, keepdims=True)
    var = jnp.mean((x - mu) ** 2, axis=-1, keepdims=True)
    return (x - mu) * jax.lax.rsqrt(var + eps) * g + b


def timm_vit_lora_forward(img, params, patch, num_heads):
    """img: (B, 3, H, W) NCHW. `patch` and `num_heads` are static ints.
    Returns logits (B, num_classes)."""
    p = params
    B, _, H, W = img.shape
    gh, gw = H // patch, W // patch
    C = p["pos_embed"].shape[-1]

    # patch embedding (glue): NCHW -> (B, gh*gw, 3*patch*patch) -> linear
    xp = img.reshape(B, 3, gh, patch, gw, patch)
    xp = xp.transpose(0, 2, 4, 1, 3, 5).reshape(B, gh * gw, 3 * patch * patch)
    tokens = xp @ p["w_patch"] + p["b_patch"]                 # (B, HW, C)

    # prepend cls token, add positional embedding
    cls = jnp.broadcast_to(p["cls_token"], (B, 1, C))
    tokens = jnp.concatenate([cls, tokens], axis=1) + p["pos_embed"]
    N = tokens.shape[1]

    # one transformer attention block; LN + LoRA-qkv is the fused Pallas kernel
    q, k, v = lora_ln_qkv(tokens, p["ln_g"], p["ln_b"],
                          p["w_q_eff"], p["w_k"], p["w_v_eff"],
                          p["b_q"], p["b_k"], p["b_v"])       # 3 x (B, N, C)
    hd = C // num_heads
    q = q.reshape(B, N, num_heads, hd)                        # free reshapes
    k = k.reshape(B, N, num_heads, hd)
    v = v.reshape(B, N, num_heads, hd)
    attn = jax.nn.softmax(
        jnp.einsum("bnhd,bmhd->bhnm", q, k) / math.sqrt(hd), axis=-1)
    out = jnp.einsum("bhnm,bmhd->bnhd", attn, v).reshape(B, N, C)
    tokens = tokens + out @ p["w_proj"] + p["b_proj"]         # residual

    # `forward_intermediates` output: patch tokens (feature map); prefix/cls
    # token unused (train_with_cls=False)
    patch_tokens = tokens[:, 1:]                              # (B, HW, C)

    # no-mask branch of TimmViTLoRA.forward: spatial mean + linear task head
    return pool_and_head(patch_tokens, p["w_head_t"], p["b_head"])


# ----------------------------------------------------------------------------
# Pure-JAX reference of the LoRA-qkv path (torch-layout weights)
# ----------------------------------------------------------------------------
def _ref_lora_qkv(x, w_qkv, b_qkv, a_q, b_q, a_v, b_v):
    hp = jax.lax.Precision.HIGHEST
    qkv = jnp.dot(x, w_qkv.T, precision=hp) + b_qkv
    C = x.shape[-1]
    new_q = jnp.dot(jnp.dot(x, a_q.T, precision=hp), b_q.T, precision=hp)
    new_v = jnp.dot(jnp.dot(x, a_v.T, precision=hp), b_v.T, precision=hp)
    qkv = qkv.at[:, :, :C].add(new_q)
    qkv = qkv.at[:, :, -C:].add(new_v)
    return qkv


# ----------------------------------------------------------------------------
# main
# ----------------------------------------------------------------------------
if __name__ == "__main__":
    key = jax.random.PRNGKey(0)
    ks = jax.random.split(key, 16)

    # small, ViT-consistent shapes
    B, H, W, patch = 2, 32, 32, 4
    C = 32                      # embed_dim
    num_heads = 4
    r = 4                       # LoRA rank
    num_classes = 8
    gh, gw = H // patch, W // patch
    N = gh * gw + 1             # + cls token

    def uniform(k, shape, bound):
        return jax.random.uniform(k, shape, jnp.float32, -bound, bound)

    raw_params = {
        # patch embed
        "w_patch": uniform(ks[0], (3 * patch * patch, C),
                           1.0 / math.sqrt(3 * patch * patch)),
        "b_patch": jnp.zeros((C,), jnp.float32),
        "cls_token": 0.02 * jax.random.normal(ks[1], (1, 1, C), jnp.float32),
        "pos_embed": 0.02 * jax.random.normal(ks[2], (1, N, C), jnp.float32),
        # block layernorm
        "ln_g": jnp.ones((C,), jnp.float32),
        "ln_b": jnp.zeros((C,), jnp.float32),
        # frozen qkv linear: nn.Linear(C, 3C)   (torch layout: (out, in))
        "w_qkv": uniform(ks[3], (3 * C, C), 1.0 / math.sqrt(C)),
        "b_qkv": uniform(ks[4], (3 * C,), 1.0 / math.sqrt(C)),
        # LoRA: A via kaiming_uniform(a=sqrt(5)); B is zero-init in the module
        # -- use small nonzero values so the adaptation path is exercised.
        "a_q": uniform(ks[5], (r, C), 1.0 / math.sqrt(C)),
        "b_q": 0.01 * jax.random.normal(ks[6], (C, r), jnp.float32),
        "a_v": uniform(ks[7], (r, C), 1.0 / math.sqrt(C)),
        "b_v": 0.01 * jax.random.normal(ks[8], (C, r), jnp.float32),
        # attention output projection
        "w_proj": uniform(ks[9], (C, C), 1.0 / math.sqrt(C)),
        "b_proj": jnp.zeros((C,), jnp.float32),
        # task head: nn.Linear(C, num_classes)
        "w_head": uniform(ks[10], (num_classes, C), 1.0 / math.sqrt(C)),
        "b_head": uniform(ks[11], (num_classes,), 1.0 / math.sqrt(C)),
    }

    # one-time compute-layout conversion + LoRA fold (outside jit)
    params = prepare_params(raw_params)

    x_img = jax.random.normal(ks[12], (B, 3, H, W), jnp.float32)

    # sanity check the fused LN + LoRA-qkv Pallas kernel against a pure-JAX
    # reference. Tolerance is intentionally loose: the kernel uses bf16 MXU
    # operands with f32 accumulation vs. an f32 Precision.HIGHEST reference.
    x_tok = jax.random.normal(ks[13], (B, N, C), jnp.float32)
    q_got, k_got, v_got = lora_ln_qkv(
        x_tok, raw_params["ln_g"], raw_params["ln_b"],
        params["w_q_eff"], params["w_k"], params["w_v_eff"],
        params["b_q"], params["b_k"], params["b_v"])
    got = jnp.concatenate([q_got, k_got, v_got], axis=-1)
    x_norm = layer_norm(x_tok, raw_params["ln_g"], raw_params["ln_b"])
    want = _ref_lora_qkv(x_norm, raw_params["w_qkv"], raw_params["b_qkv"],
                         raw_params["a_q"], raw_params["b_q"],
                         raw_params["a_v"], raw_params["b_v"])
    assert jnp.allclose(got, want, atol=3e-2, rtol=3e-2), "LN+LoRA qkv mismatch"

    # full forward (patch / num_heads are static)
    logits = jax.jit(timm_vit_lora_forward, static_argnums=(2, 3))(
        x_img, params, patch, num_heads)
    jax.block_until_ready(logits)
    assert logits.shape == (B, num_classes)
    print("KERNEL_OK")
</pallas_src>

<mosaic_0001>
module attributes {stable_mosaic.version = 11 : i64} {
  func.func @_ln_qkv_kernel(%arg0: i32, %arg1: memref<1x65x32xf32, #tpu.memory_space<vmem>>, %arg2: memref<1x32xf32, #tpu.memory_space<vmem>>, %arg3: memref<1x32xf32, #tpu.memory_space<vmem>>, %arg4: memref<32x32xbf16, #tpu.memory_space<vmem>>, %arg5: memref<32x32xbf16, #tpu.memory_space<vmem>>, %arg6: memref<32x32xbf16, #tpu.memory_space<vmem>>, %arg7: memref<1x32xf32, #tpu.memory_space<vmem>>, %arg8: memref<1x32xf32, #tpu.memory_space<vmem>>, %arg9: memref<1x32xf32, #tpu.memory_space<vmem>>, %arg10: memref<1x65x32xf32, #tpu.memory_space<vmem>>, %arg11: memref<1x65x32xf32, #tpu.memory_space<vmem>>, %arg12: memref<1x65x32xf32, #tpu.memory_space<vmem>>) attributes {dimension_semantics = [#tpu.dimension_semantics<parallel>], iteration_bounds = array<i64: 2>, scalar_prefetch = 0 : i64, scratch_operands = 0 : i64, tpu.core_type = #tpu.core_type<tc>, window_params = [{transform_indices = @transform_0, window_bounds = array<i64: 1, 65, 32>}, {pipeline_mode = #tpu.pipeline_mode<synchronous>, transform_indices = @transform_1, window_bounds = array<i64: 1, 32>}, {pipeline_mode = #tpu.pipeline_mode<synchronous>, transform_indices = @transform_2, window_bounds = array<i64: 1, 32>}, {pipeline_mode = #tpu.pipeline_mode<synchronous>, transform_indices = @transform_3, window_bounds = array<i64: 32, 32>}, {pipeline_mode = #tpu.pipeline_mode<synchronous>, transform_indices = @transform_4, window_bounds = array<i64: 32, 32>}, {pipeline_mode = #tpu.pipeline_mode<synchronous>, transform_indices = @transform_5, window_bounds = array<i64: 32, 32>}, {pipeline_mode = #tpu.pipeline_mode<synchronous>, transform_indices = @transform_6, window_bounds = array<i64: 1, 32>}, {pipeline_mode = #tpu.pipeline_mode<synchronous>, transform_indices = @transform_7, window_bounds = array<i64: 1, 32>}, {pipeline_mode = #tpu.pipeline_mode<synchronous>, transform_indices = @transform_8, window_bounds = array<i64: 1, 32>}, {transform_indices = @transform_9, window_bounds = array<i64: 1, 65, 32>}, {transform_indices = @transform_10, window_bounds = array<i64: 1, 65, 32>}, {transform_indices = @transform_11, window_bounds = array<i64: 1, 65, 32>}]} {
    %c0 = arith.constant 0 : index
    %c0_0 = arith.constant 0 : index
    %c0_1 = arith.constant 0 : index
    %0 = vector.load %arg1[%c0, %c0_0, %c0_1] : memref<1x65x32xf32, #tpu.memory_space<vmem>>, vector<1x65x32xf32>
    %1 = vector.shape_cast %0 : vector<1x65x32xf32> to vector<65x32xf32>
    %cst = arith.constant dense<0.000000e+00> : vector<65xf32>
    %2 = vector.multi_reduction <add>, %1, %cst [1] : vector<65x32xf32> to vector<65xf32>
    %3 = vector.shape_cast %2 : vector<65xf32> to vector<65x1xf32>
    %cst_2 = arith.constant 3.200000e+01 : f32
    %4 = vector.broadcast %cst_2 : f32 to vector<65x1xf32>
    %5 = arith.divf %3, %4 : vector<65x1xf32>
    %6 = vector.broadcast %5 : vector<65x1xf32> to vector<65x32xf32>
    %7 = arith.subf %1, %6 : vector<65x32xf32>
    %8 = arith.mulf %7, %7 : vector<65x32xf32>
    %cst_3 = arith.constant dense<0.000000e+00> : vector<65xf32>
    %9 = vector.multi_reduction <add>, %8, %cst_3 [1] : vector<65x32xf32> to vector<65xf32>
    %10 = vector.shape_cast %9 : vector<65xf32> to vector<65x1xf32>
    %cst_4 = arith.constant 3.200000e+01 : f32
    %11 = vector.broadcast %cst_4 : f32 to vector<65x1xf32>
    %12 = arith.divf %10, %11 : vector<65x1xf32>
    %13 = vector.broadcast %5 : vector<65x1xf32> to vector<65x32xf32>
    %14 = arith.subf %1, %13 : vector<65x32xf32>
    %cst_5 = arith.constant 9.99999997E-7 : f32
    %15 = vector.broadcast %cst_5 : f32 to vector<65x1xf32>
    %16 = arith.addf %12, %15 : vector<65x1xf32>
    %17 = math.rsqrt %16 : vector<65x1xf32>
    %18 = vector.broadcast %17 : vector<65x1xf32> to vector<65x32xf32>
    %19 = arith.mulf %14, %18 : vector<65x32xf32>
    %c0_6 = arith.constant 0 : index
    %c0_7 = arith.constant 0 : index
    %20 = vector.load %arg2[%c0_6, %c0_7] : memref<1x32xf32, #tpu.memory_space<vmem>>, vector<1x32xf32>
    %21 = vector.broadcast %20 : vector<1x32xf32> to vector<65x32xf32>
    %22 = arith.mulf %19, %21 : vector<65x32xf32>
    %c0_8 = arith.constant 0 : index
    %c0_9 = arith.constant 0 : index
    %23 = vector.load %arg3[%c0_8, %c0_9] : memref<1x32xf32, #tpu.memory_space<vmem>>, vector<1x32xf32>
    %24 = vector.broadcast %23 : vector<1x32xf32> to vector<65x32xf32>
    %25 = arith.addf %22, %24 : vector<65x32xf32>
    %26 = arith.truncf %25 : vector<65x32xf32> to vector<65x32xbf16>
    %c0_10 = arith.constant 0 : index
    %c0_11 = arith.constant 0 : index
    %27 = vector.load %arg4[%c0_10, %c0_11] : memref<32x32xbf16, #tpu.memory_space<vmem>>, vector<32x32xbf16>
    %cst_12 = arith.constant dense<0.000000e+00> : vector<65x32xf32>
    %28 = tpu.matmul %26, %27, %cst_12 {dimension_numbers = #tpu.dot_dimension_numbers<[1], [0], [0], [1], [0, 0, 1, 1], [], []>} : vector<65x32xbf16>, vector<32x32xbf16>, vector<65x32xf32> -> vector<65x32xf32>
    %c0_13 = arith.constant 0 : index
    %c0_14 = arith.constant 0 : index
    %29 = vector.load %arg7[%c0_13, %c0_14] : memref<1x32xf32, #tpu.memory_space<vmem>>, vector<1x32xf32>
    %30 = vector.broadcast %29 : vector<1x32xf32> to vector<65x32xf32>
    %31 = arith.addf %28, %30 : vector<65x32xf32>
    %c0_15 = arith.constant 0 : index
    %c0_16 = arith.constant 0 : index
    %c0_17 = arith.constant 0 : index
    %32 = vector.load %arg10[%c0_15, %c0_16, %c0_17] : memref<1x65x32xf32, #tpu.memory_space<vmem>>, vector<1x65x32xf32>
    %33 = vector.shape_cast %32 : vector<1x65x32xf32> to vector<65x32xf32>
    %34 = vector.shape_cast %31 : vector<65x32xf32> to vector<1x65x32xf32>
    tpu.vector_store %arg10[%c0_15, %c0_16, %c0_17], %34 {strides = array<i32>} : memref<1x65x32xf32, #tpu.memory_space<vmem>>, vector<1x65x32xf32>,
    %c0_18 = arith.constant 0 : index
    %c0_19 = arith.constant 0 : index
    %35 = vector.load %arg5[%c0_18, %c0_19] : memref<32x32xbf16, #tpu.memory_space<vmem>>, vector<32x32xbf16>
    %cst_20 = arith.constant dense<0.000000e+00> : vector<65x32xf32>
    %36 = tpu.matmul %26, %35, %cst_20 {dimension_numbers = #tpu.dot_dimension_numbers<[1], [0], [0], [1], [0, 0, 1, 1], [], []>} : vector<65x32xbf16>, vector<32x32xbf16>, vector<65x32xf32> -> vector<65x32xf32>
    %c0_21 = arith.constant 0 : index
    %c0_22 = arith.constant 0 : index
    %37 = vector.load %arg8[%c0_21, %c0_22] : memref<1x32xf32, #tpu.memory_space<vmem>>, vector<1x32xf32>
    %38 = vector.broadcast %37 : vector<1x32xf32> to vector<65x32xf32>
    %39 = arith.addf %36, %38 : vector<65x32xf32>
    %c0_23 = arith.constant 0 : index
    %c0_24 = arith.constant 0 : index
    %c0_25 = arith.constant 0 : index
    %40 = vector.load %arg11[%c0_23, %c0_24, %c0_25] : memref<1x65x32xf32, #tpu.memory_space<vmem>>, vector<1x65x32xf32>
    %41 = vector.shape_cast %40 : vector<1x65x32xf32> to vector<65x32xf32>
    %42 = vector.shape_cast %39 : vector<65x32xf32> to vector<1x65x32xf32>
    tpu.vector_store %arg11[%c0_23, %c0_24, %c0_25], %42 {strides = array<i32>} : memref<1x65x32xf32, #tpu.memory_space<vmem>>, vector<1x65x32xf32>,
    %c0_26 = arith.constant 0 : index
    %c0_27 = arith.constant 0 : index
    %43 = vector.load %arg6[%c0_26, %c0_27] : memref<32x32xbf16, #tpu.memory_space<vmem>>, vector<32x32xbf16>
    %cst_28 = arith.constant dense<0.000000e+00> : vector<65x32xf32>
    %44 = tpu.matmul %26, %43, %cst_28 {dimension_numbers = #tpu.dot_dimension_numbers<[1], [0], [0], [1], [0, 0, 1, 1], [], []>} : vector<65x32xbf16>, vector<32x32xbf16>, vector<65x32xf32> -> vector<65x32xf32>
    %c0_29 = arith.constant 0 : index
    %c0_30 = arith.constant 0 : index
    %45 = vector.load %arg9[%c0_29, %c0_30] : memref<1x32xf32, #tpu.memory_space<vmem>>, vector<1x32xf32>
    %46 = vector.broadcast %45 : vector<1x32xf32> to vector<65x32xf32>
    %47 = arith.addf %44, %46 : vector<65x32xf32>
    %c0_31 = arith.constant 0 : index
    %c0_32 = arith.constant 0 : index
    %c0_33 = arith.constant 0 : index
    %48 = vector.load %arg12[%c0_31, %c0_32, %c0_33] : memref<1x65x32xf32, #tpu.memory_space<vmem>>, vector<1x65x32xf32>
    %49 = vector.shape_cast %48 : vector<1x65x32xf32> to vector<65x32xf32>
    %50 = vector.shape_cast %47 : vector<65x32xf32> to vector<1x65x32xf32>
    tpu.vector_store %arg12[%c0_31, %c0_32, %c0_33], %50 {strides = array<i32>} : memref<1x65x32xf32, #tpu.memory_space<vmem>>, vector<1x65x32xf32>,
    return
  }
  func.func @transform_0(%arg0: i32) -> (i32, i32, i32) {
    %c0_i32 = arith.constant 0 : i32
    %c0_i32_0 = arith.constant 0 : i32
    %c0_i32_1 = arith.constant 0 : i32
    return %arg0, %c0_i32, %c0_i32_0 : i32, i32, i32
  }
  func.func @transform_1(%arg0: i32) -> (i32, i32) {
    %c0_i32 = arith.constant 0 : i32
    %c0_i32_0 = arith.constant 0 : i32
    %c0_i32_1 = arith.constant 0 : i32
    return %c0_i32, %c0_i32_0 : i32, i32
  }
  func.func @transform_2(%arg0: i32) -> (i32, i32) {
    %c0_i32 = arith.constant 0 : i32
    %c0_i32_0 = arith.constant 0 : i32
    %c0_i32_1 = arith.constant 0 : i32
    return %c0_i32, %c0_i32_0 : i32, i32
  }
  func.func @transform_3(%arg0: i32) -> (i32, i32) {
    %c0_i32 = arith.constant 0 : i32
    %c0_i32_0 = arith.constant 0 : i32
    %c0_i32_1 = arith.constant 0 : i32
    return %c0_i32, %c0_i32_0 : i32, i32
  }
  func.func @transform_4(%arg0: i32) -> (i32, i32) {
    %c0_i32 = arith.constant 0 : i32
    %c0_i32_0 = arith.constant 0 : i32
    %c0_i32_1 = arith.constant 0 : i32
    return %c0_i32, %c0_i32_0 : i32, i32
  }
  func.func @transform_5(%arg0: i32) -> (i32, i32) {
    %c0_i32 = arith.constant 0 : i32
    %c0_i32_0 = arith.constant 0 : i32
    %c0_i32_1 = arith.constant 0 : i32
    return %c0_i32, %c0_i32_0 : i32, i32
  }
  func.func @transform_6(%arg0: i32) -> (i32, i32) {
    %c0_i32 = arith.constant 0 : i32
    %c0_i32_0 = arith.constant 0 : i32
    %c0_i32_1 = arith.constant 0 : i32
    return %c0_i32, %c0_i32_0 : i32, i32
  }
  func.func @transform_7(%arg0: i32) -> (i32, i32) {
    %c0_i32 = arith.constant 0 : i32
    %c0_i32_0 = arith.constant 0 : i32
    %c0_i32_1 = arith.constant 0 : i32
    return %c0_i32, %c0_i32_0 : i32, i32
  }
  func.func @transform_8(%arg0: i32) -> (i32, i32) {
    %c0_i32 = arith.constant 0 : i32
    %c0_i32_0 = arith.constant 0 : i32
    %c0_i32_1 = arith.constant 0 : i32
    return %c0_i32, %c0_i32_0 : i32, i32
  }
  func.func @transform_9(%arg0: i32) -> (i32, i32, i32) {
    %c0_i32 = arith.constant 0 : i32
    %c0_i32_0 = arith.constant 0 : i32
    %c0_i32_1 = arith.constant 0 : i32
    return %arg0, %c0_i32, %c0_i32_0 : i32, i32, i32
  }
  func.func @transform_10(%arg0: i32) -> (i32, i32, i32) {
    %c0_i32 = arith.constant 0 : i32
    %c0_i32_0 = arith.constant 0 : i32
    %c0_i32_1 = arith.constant 0 : i32
    return %arg0, %c0_i32, %c0_i32_0 : i32, i32, i32
  }
  func.func @transform_11(%arg0: i32) -> (i32, i32, i32) {
    %c0_i32 = arith.constant 0 : i32
    %c0_i32_0 = arith.constant 0 : i32
    %c0_i32_1 = arith.constant 0 : i32
    return %arg0, %c0_i32, %c0_i32_0 : i32, i32, i32
  }
}

</mosaic_0001>

<llo_original>
// kernel: tpu_custom_call.1
$region0: #{tpu_custom_call.1}
  #allocation0 [shape = 'u32[]', space=smem, size = 0x4, offset = 0x4, fixed_abs, tag = 'smem constant byte address 0x4 - core index']
  #allocation1 [shape = 'u32[72,128]{1,0:T(1,128)}', space=vmem, size = 0x9000, scoped, tag = 'internal scratch']
  %s0 = inlined_call_operand.vmem [shape: f32[2,65,32], index: 0, kind: input, shape index: {}]
  %s1 = inlined_call_operand.vmem [shape: f32[1,32], index: 1, kind: input, shape index: {}]
  %s2 = inlined_call_operand.vmem [shape: f32[1,32], index: 2, kind: input, shape index: {}]
  %s3 = inlined_call_operand.vmem [shape: bf16[32,32], index: 3, kind: input, shape index: {}]
  %s4 = inlined_call_operand.vmem [shape: bf16[32,32], index: 4, kind: input, shape index: {}]
  %s5 = inlined_call_operand.vmem [shape: bf16[32,32], index: 5, kind: input, shape index: {}]
  %s6 = inlined_call_operand.vmem [shape: f32[1,32], index: 6, kind: input, shape index: {}]
  %s7 = inlined_call_operand.vmem [shape: f32[1,32], index: 7, kind: input, shape index: {}]
  %s8 = inlined_call_operand.vmem [shape: f32[1,32], index: 8, kind: input, shape index: {}]
  %s9 = inlined_call_operand.vmem [shape: f32[2,65,32], index: 9, kind: output, shape index: {0}]
  %s10 = inlined_call_operand.vmem [shape: f32[2,65,32], index: 10, kind: output, shape index: {1}]
  %s11 = inlined_call_operand.vmem [shape: f32[2,65,32], index: 11, kind: output, shape index: {2}]
  %12 = xla_tuple %s9, %s10, %s11
  %s13 = sld [smem:[#allocation0]]
  $region85: #{tpu_custom_call.1} parent=0
    _
  %s15 = ssub.s32 1, %s13
  %s16 = scalar_select 0, %s15, %s13
  loop: start=0, step=1, limit=4
  $region2: #{tpu_custom_call.1} parent=0 // loop_pre_header
    _
  $region3: #{tpu_custom_call.1} parent=0 // loop_header
    %s18 = sphi 0, %s22
    %p19 = scmp.ge.s32.totalorder %s18, 4
    %s28 = sphi 0, %s30
    %s31 = sphi 0, %s28
    %s32 = sphi 0, %s31
    %s48 = sphi 0, %s32
    %s52 = sphi 0, %s52
    %s54 = sphi 0, %s52
    %s55 = sphi 0, %s54
    %s69 = sphi 0, %s55
    %s73 = sphi 0, %s73
    %s75 = sphi 0, %s73
    %s76 = sphi 0, %s75
    %s90 = sphi 0, %s76
    %s94 = sphi 0, %s94
    %s96 = sphi 0, %s94
    %s97 = sphi 0, %s96
    %s111 = sphi 0, %s97
    %s115 = sphi 0, %s115
    %s117 = sphi 0, %s115
    %s118 = sphi 0, %s117
    %s132 = sphi 0, %s118
    %s136 = sphi 0, %s136
    %s138 = sphi 0, %s136
    %s139 = sphi 0, %s138
    %s153 = sphi 0, %s139
    %s157 = sphi 0, %s157
    %s159 = sphi 0, %s157
    %s160 = sphi 0, %s159
    %s174 = sphi 0, %s160
    %s178 = sphi 0, %s178
    %s180 = sphi 0, %s178
    %s181 = sphi 0, %s180
    %s195 = sphi 0, %s181
    %s199 = sphi 0, %s199
    %s201 = sphi 0, %s199
    %s202 = sphi 0, %s201
    %s216 = sphi 0, %s202
    %s222 = sphi 0, %s224
    %s225 = sphi 0, %s222
    %s226 = sphi 0, %s225
    %s242 = sphi 0, %s226
    %s248 = sphi 0, %s250
    %s251 = sphi 0, %s248
    %s252 = sphi 0, %s251
    %s268 = sphi 0, %s252
    %s274 = sphi 0, %s276
    %s277 = sphi 0, %s274
    %s278 = sphi 0, %s277
    %s294 = sphi 0, %s278
  $region4: #{tpu_custom_call.1} parent=0 // loop_header_branch
    %21 = sbr.rel (%p19) target = $region8
  $region5: #{tpu_custom_call.1} parent=0 // loop_body
    %s23 = ssub.s32 %s18, 1
    %s24 = ssub.s32 %s18, 2
    %s25 = sadd.s32 %s18, 1
    %s26 = ssub.s32 %s18, %s25
    %p27 = scmp.eq.s32.totalorder %s26, 0
    %s29 = sadd.s32 %s28, 1
    %s30 = scalar_select %p27, %s28, %s29
    %p33 = pneg %p27
    %p34 = scmp.eq.s32.totalorder %s18, 1
    %p35 = por %p33, %p34
    %p36 = scmp.ne.s32.totalorder %s28, %s31
    %p37 = scmp.eq.s32.totalorder %s18, 0
    %p38 = por %p36, %p37
    %p39 = scmp.ne.s32.totalorder %s28, %s31
    %p40 = scmp.eq.s32.totalorder %s23, 1
    %p41 = por %p39, %p40
    %p42 = scmp.ne.s32.totalorder %s31, %s32
    %p43 = scmp.eq.s32.totalorder %s23, 0
    %p44 = por %p42, %p43
    %p45 = scmp.ne.s32.totalorder %s31, %s32
    %p46 = scmp.eq.s32.totalorder %s24, 1
    %p47 = por %p45, %p46
    %p49 = scmp.ne.s32.totalorder %s32, %s48
    %p50 = scmp.eq.s32.totalorder %s24, 0
    %p51 = por %p49, %p50
    %s53 = sadd.s32 %s52, 1
    %p56 = scmp.eq.s32.totalorder %s18, 1
    %p57 = scmp.ne.s32.totalorder %s52, %s54
    %p58 = scmp.eq.s32.totalorder %s18, 0
    %p59 = por %p57, %p58
    %p60 = scmp.ne.s32.totalorder %s52, %s54
    %p61 = scmp.eq.s32.totalorder %s23, 1
    %p62 = por %p60, %p61
    %p63 = scmp.ne.s32.totalorder %s54, %s55
    %p64 = scmp.eq.s32.totalorder %s23, 0
    %p65 = por %p63, %p64
    %p66 = scmp.ne.s32.totalorder %s54, %s55
    %p67 = scmp.eq.s32.totalorder %s24, 1
    %p68 = por %p66, %p67
    %p70 = scmp.ne.s32.totalorder %s55, %s69
    %p71 = scmp.eq.s32.totalorder %s24, 0
    %p72 = por %p70, %p71
    %s74 = sadd.s32 %s73, 1
    %p77 = scmp.eq.s32.totalorder %s18, 1
    %p78 = scmp.ne.s32.totalorder %s73, %s75
    %p79 = scmp.eq.s32.totalorder %s18, 0
    %p80 = por %p78, %p79
    %p81 = scmp.ne.s32.totalorder %s73, %s75
    %p82 = scmp.eq.s32.totalorder %s23, 1
    %p83 = por %p81, %p82
    %p84 = scmp.ne.s32.totalorder %s75, %s76
    %p85 = scmp.eq.s32.totalorder %s23, 0
    %p86 = por %p84, %p85
    %p87 = scmp.ne.s32.totalorder %s75, %s76
    %p88 = scmp.eq.s32.totalorder %s24, 1
    %p89 = por %p87, %p88
    %p91 = scmp.ne.s32.totalorder %s76, %s90
    %p92 = scmp.eq.s32.totalorder %s24, 0
    %p93 = por %p91, %p92
    %s95 = sadd.s32 %s94, 1
    %p98 = scmp.eq.s32.totalorder %s18, 1
    %p99 = scmp.ne.s32.totalorder %s94, %s96
    %p100 = scmp.eq.s32.totalorder %s18, 0
    %p101 = por %p99, %p100
    %p102 = scmp.ne.s32.totalorder %s94, %s96
    %p103 = scmp.eq.s32.totalorder %s23, 1
    %p104 = por %p102, %p103
    %p105 = scmp.ne.s32.totalorder %s96, %s97
    %p106 = scmp.eq.s32.totalorder %s23, 0
    %p107 = por %p105, %p106
    %p108 = scmp.ne.s32.totalorder %s96, %s97
    %p109 = scmp.eq.s32.totalorder %s24, 1
    %p110 = por %p108, %p109
    %p112 = scmp.ne.s32.totalorder %s97, %s111
    %p113 = scmp.eq.s32.totalorder %s24, 0
    %p114 = por %p112, %p113
    %s116 = sadd.s32 %s115, 1
    %p119 = scmp.eq.s32.totalorder %s18, 1
    %p120 = scmp.ne.s32.totalorder %s115, %s117
    %p121 = scmp.eq.s32.totalorder %s18, 0
    %p122 = por %p120, %p121
    %p123 = scmp.ne.s32.totalorder %s115, %s117
    %p124 = scmp.eq.s32.totalorder %s23, 1
    %p125 = por %p123, %p124
    %p126 = scmp.ne.s32.totalorder %s117, %s118
    %p127 = scmp.eq.s32.totalorder %s23, 0
    %p128 = por %p126, %p127
    %p129 = scmp.ne.s32.totalorder %s117, %s118
    %p130 = scmp.eq.s32.totalorder %s24, 1
    %p131 = por %p129, %p130
    %p133 = scmp.ne.s32.totalorder %s118, %s132
    %p134 = scmp.eq.s32.totalorder %s24, 0
    %p135 = por %p133, %p134
    %s137 = sadd.s32 %s136, 1
    %p140 = scmp.eq.s32.totalorder %s18, 1
    %p141 = scmp.ne.s32.totalorder %s136, %s138
    %p142 = scmp.eq.s32.totalorder %s18, 0
    %p143 = por %p141, %p142
    %p144 = scmp.ne.s32.totalorder %s136, %s138
    %p145 = scmp.eq.s32.totalorder %s23, 1
    %p146 = por %p144, %p145
    %p147 = scmp.ne.s32.totalorder %s138, %s139
    %p148 = scmp.eq.s32.totalorder %s23, 0
    %p149 = por %p147, %p148
    %p150 = scmp.ne.s32.totalorder %s138, %s139
    %p151 = scmp.eq.s32.totalorder %s24, 1
    %p152 = por %p150, %p151
    %p154 = scmp.ne.s32.totalorder %s139, %s153
    %p155 = scmp.eq.s32.totalorder %s24, 0
    %p156 = por %p154, %p155
    %s158 = sadd.s32 %s157, 1
    %p161 = scmp.eq.s32.totalorder %s18, 1
    %p162 = scmp.ne.s32.totalorder %s157, %s159
    %p163 = scmp.eq.s32.totalorder %s18, 0
    %p164 = por %p162, %p163
    %p165 = scmp.ne.s32.totalorder %s157, %s159
    %p166 = scmp.eq.s32.totalorder %s23, 1
    %p167 = por %p165, %p166
    %p168 = scmp.ne.s32.totalorder %s159, %s160
    %p169 = scmp.eq.s32.totalorder %s23, 0
    %p170 = por %p168, %p169
    %p171 = scmp.ne.s32.totalorder %s159, %s160
    %p172 = scmp.eq.s32.totalorder %s24, 1
    %p173 = por %p171, %p172
    %p175 = scmp.ne.s32.totalorder %s160, %s174
    %p176 = scmp.eq.s32.totalorder %s24, 0
    %p177 = por %p175, %p176
    %s179 = sadd.s32 %s178, 1
    %p182 = scmp.eq.s32.totalorder %s18, 1
    %p183 = scmp.ne.s32.totalorder %s178, %s180
    %p184 = scmp.eq.s32.totalorder %s18, 0
    %p185 = por %p183, %p184
    %p186 = scmp.ne.s32.totalorder %s178, %s180
    %p187 = scmp.eq.s32.totalorder %s23, 1
    %p188 = por %p186, %p187
    %p189 = scmp.ne.s32.totalorder %s180, %s181
    %p190 = scmp.eq.s32.totalorder %s23, 0
    %p191 = por %p189, %p190
    %p192 = scmp.ne.s32.totalorder %s180, %s181
    %p193 = scmp.eq.s32.totalorder %s24, 1
    %p194 = por %p192, %p193
    %p196 = scmp.ne.s32.totalorder %s181, %s195
    %p197 = scmp.eq.s32.totalorder %s24, 0
    %p198 = por %p196, %p197
    %s200 = sadd.s32 %s199, 1
    %p203 = scmp.eq.s32.totalorder %s18, 1
    %p204 = scmp.ne.s32.totalorder %s199, %s201
    %p205 = scmp.eq.s32.totalorder %s18, 0
    %p206 = por %p204, %p205
    %p207 = scmp.ne.s32.totalorder %s199, %s201
    %p208 = scmp.eq.s32.totalorder %s23, 1
    %p209 = por %p207, %p208
    %p210 = scmp.ne.s32.totalorder %s201, %s202
    %p211 = scmp.eq.s32.totalorder %s23, 0
    %p212 = por %p210, %p211
    %p213 = scmp.ne.s32.totalorder %s201, %s202
    %p214 = scmp.eq.s32.totalorder %s24, 1
    %p215 = por %p213, %p214
    %p217 = scmp.ne.s32.totalorder %s202, %s216
    %p218 = scmp.eq.s32.totalorder %s24, 0
    %p219 = por %p217, %p218
    %s220 = ssub.s32 %s18, %s25
    %p221 = scmp.eq.s32.totalorder %s220, 0
    %s223 = sadd.s32 %s222, 1
    %s224 = scalar_select %p221, %s222, %s223
    %p227 = pneg %p221
    %p228 = scmp.eq.s32.totalorder %s18, 1
    %p229 = por %p227, %p228
    %p230 = scmp.ne.s32.totalorder %s222, %s225
    %p231 = scmp.eq.s32.totalorder %s18, 0
    %p232 = por %p230, %p231
    %p233 = scmp.ne.s32.totalorder %s222, %s225
    %p234 = scmp.eq.s32.totalorder %s23, 1
    %p235 = por %p233, %p234
    %p236 = scmp.ne.s32.totalorder %s225, %s226
    %p237 = scmp.eq.s32.totalorder %s23, 0
    %p238 = por %p236, %p237
    %p239 = scmp.ne.s32.totalorder %s225, %s226
    %p240 = scmp.eq.s32.totalorder %s24, 1
    %p241 = por %p239, %p240
    %p243 = scmp.ne.s32.totalorder %s226, %s242
    %p244 = scmp.eq.s32.totalorder %s24, 0
    %p245 = por %p243, %p244
    %s246 = ssub.s32 %s18, %s25
    %p247 = scmp.eq.s32.totalorder %s246, 0
    %s249 = sadd.s32 %s248, 1
    %s250 = scalar_select %p247, %s248, %s249
    %p253 = pneg %p247
    %p254 = scmp.eq.s32.totalorder %s18, 1
    %p255 = por %p253, %p254
    %p256 = scmp.ne.s32.totalorder %s248, %s251
    %p257 = scmp.eq.s32.totalorder %s18, 0
    %p258 = por %p256, %p257
    %p259 = scmp.ne.s32.totalorder %s248, %s251
    %p260 = scmp.eq.s32.totalorder %s23, 1
    %p261 = por %p259, %p260
    %p262 = scmp.ne.s32.totalorder %s251, %s252
    %p263 = scmp.eq.s32.totalorder %s23, 0
    %p264 = por %p262, %p263
    %p265 = scmp.ne.s32.totalorder %s251, %s252
    %p266 = scmp.eq.s32.totalorder %s24, 1
    %p267 = por %p265, %p266
    %p269 = scmp.ne.s32.totalorder %s252, %s268
    %p270 = scmp.eq.s32.totalorder %s24, 0
    %p271 = por %p269, %p270
    %s272 = ssub.s32 %s18, %s25
    %p273 = scmp.eq.s32.totalorder %s272, 0
    %s275 = sadd.s32 %s274, 1
    %s276 = scalar_select %p273, %s274, %s275
    %p279 = pneg %p273
    %p280 = scmp.eq.s32.totalorder %s18, 1
    %p281 = por %p279, %p280
    %p282 = scmp.ne.s32.totalorder %s274, %s277
    %p283 = scmp.eq.s32.totalorder %s18, 0
    %p284 = por %p282, %p283
    %p285 = scmp.ne.s32.totalorder %s274, %s277
    %p286 = scmp.eq.s32.totalorder %s23, 1
    %p287 = por %p285, %p286
    %p288 = scmp.ne.s32.totalorder %s277, %s278
    %p289 = scmp.eq.s32.totalorder %s23, 0
    %p290 = por %p288, %p289
    %p291 = scmp.ne.s32.totalorder %s277, %s278
    %p292 = scmp.eq.s32.totalorder %s24, 1
    %p293 = por %p291, %p292
    %p295 = scmp.ne.s32.totalorder %s278, %s294
    %p296 = scmp.eq.s32.totalorder %s24, 0
    %p297 = por %p295, %p296
    %p298 = scmp.le.s32.totalorder 1, %s18
    %p299 = scmp.lt.s32.totalorder %s18, 3
    %p300 = pnand %p298, %p299
    %p301 = pneg %p300
    // Predicated region
    $region9: #{tpu_custom_call.1} parent=5 // pred_check
      _
    $region10: #{tpu_custom_call.1} parent=5 // pred_check_branch
      %303 = sbr.rel (%p300) target = $region12
    $region11: #{tpu_custom_call.1} parent=5 // pred_region
      %s304 = ssub.s32 %s18, 1
      // Predicated region
      $region13: #{tpu_custom_call.1} parent=11 // pred_check
        %p305 = pneg %p65
      $region14: #{tpu_custom_call.1} parent=11 // pred_check_branch
        %307 = sbr.rel (%p305) target = $region16
      $region15: #{tpu_custom_call.1} parent=11 // pred_region
        _
      $region16: #{tpu_custom_call.1} parent=11 // pred_fallthru
        _
      // Predicated region
      $region17: #{tpu_custom_call.1} parent=11 // pred_check
        %p308 = pneg %p86
      $region18: #{tpu_custom_call.1} parent=11 // pred_check_branch
        %310 = sbr.rel (%p308) target = $region20
      $region19: #{tpu_custom_call.1} parent=11 // pred_region
        _
      $region20: #{tpu_custom_call.1} parent=11 // pred_fallthru
        _
      // Predicated region
      $region21: #{tpu_custom_call.1} parent=11 // pred_check
        %p311 = pneg %p107
      $region22: #{tpu_custom_call.1} parent=11 // pred_check_branch
        %313 = sbr.rel (%p311) target = $region24
      $region23: #{tpu_custom_call.1} parent=11 // pred_region
        _
      $region24: #{tpu_custom_call.1} parent=11 // pred_fallthru
        _
      // Predicated region
      $region25: #{tpu_custom_call.1} parent=11 // pred_check
        %p314 = pneg %p128
      $region26: #{tpu_custom_call.1} parent=11 // pred_check_branch
        %316 = sbr.rel (%p314) target = $region28
      $region27: #{tpu_custom_call.1} parent=11 // pred_region
        _
      $region28: #{tpu_custom_call.1} parent=11 // pred_fallthru
        _
      // Predicated region
      $region29: #{tpu_custom_call.1} parent=11 // pred_check
        %p317 = pneg %p149
      $region30: #{tpu_custom_call.1} parent=11 // pred_check_branch
        %319 = sbr.rel (%p317) target = $region32
      $region31: #{tpu_custom_call.1} parent=11 // pred_region
        _
      $region32: #{tpu_custom_call.1} parent=11 // pred_fallthru
        _
      // Predicated region
      $region33: #{tpu_custom_call.1} parent=11 // pred_check
        %p320 = pneg %p170
      $region34: #{tpu_custom_call.1} parent=11 // pred_check_branch
        %322 = sbr.rel (%p320) target = $region36
      $region35: #{tpu_custom_call.1} parent=11 // pred_region
        _
      $region36: #{tpu_custom_call.1} parent=11 // pred_fallthru
        _
      // Predicated region
      $region37: #{tpu_custom_call.1} parent=11 // pred_check
        %p323 = pneg %p191
      $region38: #{tpu_custom_call.1} parent=11 // pred_check_branch
        %325 = sbr.rel (%p323) target = $region40
      $region39: #{tpu_custom_call.1} parent=11 // pred_region
        _
      $region40: #{tpu_custom_call.1} parent=11 // pred_fallthru
        _
      // Predicated region
      $region41: #{tpu_custom_call.1} parent=11 // pred_check
        %p326 = pneg %p212
      $region42: #{tpu_custom_call.1} parent=11 // pred_check_branch
        %328 = sbr.rel (%p326) target = $region44
      $region43: #{tpu_custom_call.1} parent=11 // pred_region
        _
      $region44: #{tpu_custom_call.1} parent=11 // pred_fallthru
        _
    $region12: #{tpu_custom_call.1} parent=5 // pred_fallthru
      _
    %p329 = scmp.lt.s32.totalorder %s18, 2
    // Predicated region
    $region45: #{tpu_custom_call.1} parent=5 // pred_check
      %p330 = pneg %p329
    $region46: #{tpu_custom_call.1} parent=5 // pred_check_branch
      %332 = sbr.rel (%p330) target = $region48
    $region47: #{tpu_custom_call.1} parent=5 // pred_region
      // Predicated region
      $region49: #{tpu_custom_call.1} parent=47 // pred_check
        %p333 = pneg %p38
      $region50: #{tpu_custom_call.1} parent=47 // pred_check_branch
        %335 = sbr.rel (%p333) target = $region52
      $region51: #{tpu_custom_call.1} parent=47 // pred_region
        %p336 = scmp.lt.s32.totalorder %s18, 1
        %s337 = scalar_select %p336, %s18, 1
        %s338 = smul.addr %s337, 9
        %s339 = smul.addr %s338, 8
        %s340 = scalar_lea.vmem %s0, %s339
      $region52: #{tpu_custom_call.1} parent=47 // pred_fallthru
        _
    $region48: #{tpu_custom_call.1} parent=5 // pred_fallthru
      _
    %p341 = scmp.le.s32.totalorder 1, %s18
    %p342 = scmp.lt.s32.totalorder %s18, 3
    %p343 = pnand %p341, %p342
    %p344 = pneg %p343
    // Predicated region
    $region53: #{tpu_custom_call.1} parent=5 // pred_check
      _
    $region54: #{tpu_custom_call.1} parent=5 // pred_check_branch
      %346 = sbr.rel (%p343) target = $region56
    $region55: #{tpu_custom_call.1} parent=5 // pred_region
      %s347 = ssub.s32 %s18, 1
      %p348 = scmp.lt.s32.totalorder %s23, 1
      %s349 = scalar_select %p348, %s23, 1
      %s350 = smul.addr %s349, 9
      %s351 = smul.addr %s350, 8
      %s352 = scalar_lea.vmem %s0, %s351
      %p353 = pneg %p44
      %p354 = pneg %p41
      %p355 = pneg %p65
      %p356 = pneg %p62
      %p357 = pneg %p86
      %p358 = pneg %p83
      %p359 = pneg %p107
      %p360 = pneg %p104
      %p361 = pneg %p128
      %p362 = pneg %p125
      %p363 = pneg %p149
      %p364 = pneg %p146
      %p365 = pneg %p170
      %p366 = pneg %p167
      %p367 = pneg %p191
      %p368 = pneg %p188
      %p369 = pneg %p212
      %p370 = pneg %p209
      %p371 = pneg %p238
      %p372 = pneg %p235
      %p373 = scmp.lt.s32.totalorder %s23, 1
      %s374 = scalar_select %p373, %s23, 1
      %s375 = smul.addr %s374, 9
      %s376 = smul.addr %s375, 8
      %s377 = scalar_lea.vmem %s9, %s376
      %p378 = pneg %p264
      %p379 = pneg %p261
      %p380 = scmp.lt.s32.totalorder %s23, 1
      %s381 = scalar_select %p380, %s23, 1
      %s382 = smul.addr %s381, 9
      %s383 = smul.addr %s382, 8
      %s384 = scalar_lea.vmem %s10, %s383
      %p385 = pneg %p290
      %p386 = pneg %p287
      %p387 = scmp.lt.s32.totalorder %s23, 1
      %s388 = scalar_select %p387, %s23, 1
      %s389 = smul.addr %s388, 9
      %s390 = smul.addr %s389, 8
      %s391 = scalar_lea.vmem %s11, %s390
      %p392 = scmp.lt.s32.totalorder %s23, 1
      %s393 = scalar_select %p392, %s23, 1
      %s394 = smul.addr %s393, 9
      %s395 = smul.addr %s394, 8
      %s396 = scalar_lea.vmem %s0, %s395
      %p397 = scmp.lt.s32.totalorder %s23, 1
      %s398 = scalar_select %p397, %s23, 1
      %s399 = smul.addr %s398, 9
      %s400 = smul.addr %s399, 8
      %s401 = scalar_lea.vmem %s9, %s400
      %p402 = scmp.lt.s32.totalorder %s23, 1
      %s403 = scalar_select %p402, %s23, 1
      %s404 = smul.addr %s403, 9
      %s405 = smul.addr %s404, 8
      %s406 = scalar_lea.vmem %s10, %s405
      %p407 = scmp.lt.s32.totalorder %s23, 1
      %s408 = scalar_select %p407, %s23, 1
      %s409 = smul.addr %s408, 9
      %s410 = smul.addr %s409, 8
      %s411 = scalar_lea.vmem %s11, %s410
      %v413 = vld [vmem:[%s396] sm:$0xff]
      %v414 = vld [vmem:[%s396 + $0x8] sm:$0xff]
      %v415 = vld [vmem:[%s396 + $0x10] sm:$0xff]
      %v416 = vld [vmem:[%s396 + $0x18] sm:$0xff]
      %v417 = vld [vmem:[%s396 + $0x20] sm:$0xff]
      %v418 = vld [vmem:[%s396 + $0x28] sm:$0xff]
      %v419 = vld [vmem:[%s396 + $0x30] sm:$0xff]
      %v420 = vld [vmem:[%s396 + $0x38] sm:$0xff]
      %v421 = vld [vmem:[%s396 + $0x40] sm:$0x1]
      %vm422 = vcmask 261120
      %v423 = vsel %vm422, %v413, 0.0
      %424 = vadd.xlane.f32.xlu0 %v423
      %v425 = vpop.xlane.xlu0 %424
      %v426 = vsel %vm422, %v414, 0.0
      %427 = vadd.xlane.f32.xlu0 %v426
      %v428 = vpop.xlane.xlu0 %427
      %v429 = vsel %vm422, %v415, 0.0
      %430 = vadd.xlane.f32.xlu0 %v429
      %v431 = vpop.xlane.xlu0 %430
      %v432 = vsel %vm422, %v416, 0.0
      %433 = vadd.xlane.f32.xlu0 %v432
      %v434 = vpop.xlane.xlu0 %433
      %v435 = vsel %vm422, %v417, 0.0
      %436 = vadd.xlane.f32.xlu0 %v435
      %v437 = vpop.xlane.xlu0 %436
      %v438 = vsel %vm422, %v418, 0.0
      %439 = vadd.xlane.f32.xlu0 %v438
      %v440 = vpop.xlane.xlu0 %439
      %v441 = vsel %vm422, %v419, 0.0
      %442 = vadd.xlane.f32.xlu0 %v441
      %v443 = vpop.xlane.xlu0 %442
      %v444 = vsel %vm422, %v420, 0.0
      %445 = vadd.xlane.f32.xlu0 %v444
      %v446 = vpop.xlane.xlu0 %445
      %vm447 = vcmask 253952
      %v448 = vsel %vm447, %v421, 0.0
      %449 = vadd.xlane.f32.xlu0 %v448
      %v450 = vpop.xlane.xlu0 %449
      %v451 = vrcp.pop 32.0
      %v452 = vmul.f32 32.0, %v451
      %v453 = vsub.f32 1.0, %v452
      %v454 = vmul.f32 %v451, %v453
      %v455 = vadd.f32 %v451, %v454
      %vm456 = vweird.f32 %v451
      %v457 = vsel %vm456, %v451, %v455
      %v458 = vmul.f32 %v425, %v457
      %v459 = vmul.f32 %v428, %v457
      %v460 = vmul.f32 %v431, %v457
      %v461 = vmul.f32 %v434, %v457
      %v462 = vmul.f32 %v437, %v457
      %v463 = vmul.f32 %v440, %v457
      %v464 = vmul.f32 %v443, %v457
      %v465 = vmul.f32 %v446, %v457
      %v466 = vmul.f32 %v450, %v457
      %v467 = vsub.f32 %v413, %v458
      %v468 = vsub.f32 %v414, %v459
      %v469 = vsub.f32 %v415, %v460
      %v470 = vsub.f32 %v416, %v461
      %v471 = vsub.f32 %v417, %v462
      %v472 = vsub.f32 %v418, %v463
      %v473 = vsub.f32 %v419, %v464
      %v474 = vsub.f32 %v420, %v465
      %v475 = vsub.f32 %v421, %v466
      %v476 = vmul.f32 %v467, %v467
      %v477 = vmul.f32 %v468, %v468
      %v478 = vmul.f32 %v469, %v469
      %v479 = vmul.f32 %v470, %v470
      %v480 = vmul.f32 %v471, %v471
      %v481 = vmul.f32 %v472, %v472
      %v482 = vmul.f32 %v473, %v473
      %v483 = vmul.f32 %v474, %v474
      %v484 = vmul.f32 %v475, %v475
      %v485 = vsel %vm422, %v476, 0.0
      %486 = vadd.xlane.f32.xlu0 %v485
      %v487 = vpop.xlane.xlu0 %486
      %v488 = vsel %vm422, %v477, 0.0
      %489 = vadd.xlane.f32.xlu0 %v488
      %v490 = vpop.xlane.xlu0 %489
      %v491 = vsel %vm422, %v478, 0.0
      %492 = vadd.xlane.f32.xlu0 %v491
      %v493 = vpop.xlane.xlu0 %492
      %v494 = vsel %vm422, %v479, 0.0
      %495 = vadd.xlane.f32.xlu0 %v494
      %v496 = vpop.xlane.xlu0 %495
      %v497 = vsel %vm422, %v480, 0.0
      %498 = vadd.xlane.f32.xlu0 %v497
      %v499 = vpop.xlane.xlu0 %498
      %v500 = vsel %vm422, %v481, 0.0
      %501 = vadd.xlane.f32.xlu0 %v500
      %v502 = vpop.xlane.xlu0 %501
      %v503 = vsel %vm422, %v482, 0.0
      %504 = vadd.xlane.f32.xlu0 %v503
      %v505 = vpop.xlane.xlu0 %504
      %v506 = vsel %vm422, %v483, 0.0
      %507 = vadd.xlane.f32.xlu0 %v506
      %v508 = vpop.xlane.xlu0 %507
      %v509 = vsel %vm447, %v484, 0.0
      %510 = vadd.xlane.f32.xlu0 %v509
      %v511 = vpop.xlane.xlu0 %510
      %v512 = vmul.f32 %v487, %v457
      %v513 = vmul.f32 %v490, %v457
      %v514 = vmul.f32 %v493, %v457
      %v515 = vmul.f32 %v496, %v457
      %v516 = vmul.f32 %v499, %v457
      %v517 = vmul.f32 %v502, %v457
      %v518 = vmul.f32 %v505, %v457
      %v519 = vmul.f32 %v508, %v457
      %v520 = vmul.f32 %v511, %v457
      %v521 = vadd.f32 %v512, 1e-06
      %v522 = vadd.f32 %v513, 1e-06
      %v523 = vadd.f32 %v514, 1e-06
      %v524 = vadd.f32 %v515, 1e-06
      %v525 = vadd.f32 %v516, 1e-06
      %v526 = vadd.f32 %v517, 1e-06
      %v527 = vadd.f32 %v518, 1e-06
      %v528 = vadd.f32 %v519, 1e-06
      %v529 = vadd.f32 %v520, 1e-06
      %v530 = vrsqrt.pop %v521
      %v531 = vmul.f32 %v530, %v521
      %v532 = vmul.f32 %v531, %v530
      %v533 = vmul.f32 0.5, %v532
      %v534 = vsub.f32 1.5, %v533
      %v535 = vmul.f32 %v530, %v534
      %vm536 = vweird.f32 %v521
      %vm537 = vweird.f32 %v530
      %vm538 = vmor %vm536, %vm537
      %v539 = vsel %vm538, %v530, %v535
      %v540 = vrsqrt.pop %v522
      %v541 = vmul.f32 %v540, %v522
      %v542 = vmul.f32 %v541, %v540
      %v543 = vmul.f32 0.5, %v542
      %v544 = vsub.f32 1.5, %v543
      %v545 = vmul.f32 %v540, %v544
      %vm546 = vweird.f32 %v522
      %vm547 = vweird.f32 %v540
      %vm548 = vmor %vm546, %vm547
      %v549 = vsel %vm548, %v540, %v545
      %v550 = vrsqrt.pop %v523
      %v551 = vmul.f32 %v550, %v523
      %v552 = vmul.f32 %v551, %v550
      %v553 = vmul.f32 0.5, %v552
      %v554 = vsub.f32 1.5, %v553
      %v555 = vmul.f32 %v550, %v554
      %vm556 = vweird.f32 %v523
      %vm557 = vweird.f32 %v550
      %vm558 = vmor %vm556, %vm557
      %v559 = vsel %vm558, %v550, %v555
      %v560 = vrsqrt.pop %v524
      %v561 = vmul.f32 %v560, %v524
      %v562 = vmul.f32 %v561, %v560
      %v563 = vmul.f32 0.5, %v562
      %v564 = vsub.f32 1.5, %v563
      %v565 = vmul.f32 %v560, %v564
      %vm566 = vweird.f32 %v524
      %vm567 = vweird.f32 %v560
      %vm568 = vmor %vm566, %vm567
      %v569 = vsel %vm568, %v560, %v565
      %v570 = vrsqrt.pop %v525
      %v571 = vmul.f32 %v570, %v525
      %v572 = vmul.f32 %v571, %v570
      %v573 = vmul.f32 0.5, %v572
      %v574 = vsub.f32 1.5, %v573
      %v575 = vmul.f32 %v570, %v574
      %vm576 = vweird.f32 %v525
      %vm577 = vweird.f32 %v570
      %vm578 = vmor %vm576, %vm577
      %v579 = vsel %vm578, %v570, %v575
      %v580 = vrsqrt.pop %v526
      %v581 = vmul.f32 %v580, %v526
      %v582 = vmul.f32 %v581, %v580
      %v583 = vmul.f32 0.5, %v582
      %v584 = vsub.f32 1.5, %v583
      %v585 = vmul.f32 %v580, %v584
      %vm586 = vweird.f32 %v526
      %vm587 = vweird.f32 %v580
      %vm588 = vmor %vm586, %vm587
      %v589 = vsel %vm588, %v580, %v585
      %v590 = vrsqrt.pop %v527
      %v591 = vmul.f32 %v590, %v527
      %v592 = vmul.f32 %v591, %v590
      %v593 = vmul.f32 0.5, %v592
      %v594 = vsub.f32 1.5, %v593
      %v595 = vmul.f32 %v590, %v594
      %vm596 = vweird.f32 %v527
      %vm597 = vweird.f32 %v590
      %vm598 = vmor %vm596, %vm597
      %v599 = vsel %vm598, %v590, %v595
      %v600 = vrsqrt.pop %v528
      %v601 = vmul.f32 %v600, %v528
      %v602 = vmul.f32 %v601, %v600
      %v603 = vmul.f32 0.5, %v602
      %v604 = vsub.f32 1.5, %v603
      %v605 = vmul.f32 %v600, %v604
      %vm606 = vweird.f32 %v528
      %vm607 = vweird.f32 %v600
      %vm608 = vmor %vm606, %vm607
      %v609 = vsel %vm608, %v600, %v605
      %v610 = vrsqrt.pop %v529
      %v611 = vmul.f32 %v610, %v529
      %v612 = vmul.f32 %v611, %v610
      %v613 = vmul.f32 0.5, %v612
      %v614 = vsub.f32 1.5, %v613
      %v615 = vmul.f32 %v610, %v614
      %vm616 = vweird.f32 %v529
      %vm617 = vweird.f32 %v610
      %vm618 = vmor %vm616, %vm617
      %v619 = vsel %vm618, %v610, %v615
      %v620 = vmul.f32 %v467, %v539
      %v621 = vmul.f32 %v468, %v549
      %v622 = vmul.f32 %v469, %v559
      %v623 = vmul.f32 %v470, %v569
      %v624 = vmul.f32 %v471, %v579
      %v625 = vmul.f32 %v472, %v589
      %v626 = vmul.f32 %v473, %v599
      %v627 = vmul.f32 %v474, %v609
      %v628 = vmul.f32 %v475, %v619
      %v629 = vld [vmem:[%s1] sm:$0x1]
      %v631 = vperm.slane %v629, 0
      %v633 = vmul.f32 %v620, %v631
      %v634 = vmul.f32 %v621, %v631
      %v635 = vmul.f32 %v622, %v631
      %v636 = vmul.f32 %v623, %v631
      %v637 = vmul.f32 %v624, %v631
      %v638 = vmul.f32 %v625, %v631
      %v639 = vmul.f32 %v626, %v631
      %v640 = vmul.f32 %v627, %v631
      %v641 = vmul.f32 %v628, %v631
      %v642 = vld [vmem:[%s2] sm:$0x1]
      %v644 = vperm.slane %v642, 0
      %v646 = vadd.f32 %v633, %v644
      %v647 = vadd.f32 %v634, %v644
      %v648 = vadd.f32 %v635, %v644
      %v649 = vadd.f32 %v636, %v644
      %v650 = vadd.f32 %v637, %v644
      %v651 = vadd.f32 %v638, %v644
      %v652 = vadd.f32 %v639, %v644
      %v653 = vadd.f32 %v640, %v644
      %v654 = vadd.f32 %v641, %v644
      %v655 = vpack.c.bf16 %v647, %v646
      %v656 = vpack.c.bf16 %v649, %v648
      %v657 = vpack.c.bf16 %v651, %v650
      %v658 = vpack.c.bf16 %v653, %v652
      %v659 = vpack.c.bf16 %v654, %v654
      %v660 = vld [vmem:[%s3] sm:$0xf]
      %v661 = vld [vmem:[%s3 + $0x4] sm:$0xf]
      %v662 = vld [vmem:[%s3 + $0x8] sm:$0xf]
      %v663 = vld [vmem:[%s3 + $0xc] sm:$0xf]
      %v664 = vld [vmem:[%s6] sm:$0x1]
      %v666 = vperm.slane %v664, 0
      %v672 = vunpack.c.l.b16 %v660
      %v673 = vunpack.c.l.b16 %v661
      %v674 = vunpack.c.l.b16 %v662
      %v675 = vunpack.c.l.b16 %v663
      %v676 = vpack.c.b16 %v673, %v672
      %v677 = vpack.c.b16 %v675, %v674
      %v681 = vsel %vm422, %v655, 0
      %v684 = vsel %vm422, %v656, 0
      %v687 = vsel %vm422, %v657, 0
      %v690 = vsel %vm422, %v658, 0
      %v693 = vsel %vm422, %v659, 0
      %695 = vmatpush.bf16.msra.mxu0 0
      %696 = vmatpush.bf16.msra.mxu0 0
      %697 = vmatpush.bf16.msra.mxu0 0
      %698 = vmatpush.bf16.msra.mxu0 0
      %699 = vmatpush.bf16.msra.mxu0 0
      %700 = vmatpush.bf16.msra.mxu0 0
      %701 = vmatpush.bf16.msra.mxu0 %v677
      %702 = vmatpush.bf16.msra.mxu0 %v676
      %703 = vmatmul.bf16.gmra.mxu0 %v681
      %v704 = vpop.f32.mrf.mxu0
      %v705 = vadd.f32 %v666, %v704
      %v706 = vpop.f32.mrf.mxu0
      %v707 = vadd.f32 %v666, %v706
      %708 = vmatmul.bf16.gmra.mxu0 %v684
      %v709 = vpop.f32.mrf.mxu0
      %v710 = vadd.f32 %v666, %v709
      %v711 = vpop.f32.mrf.mxu0
      %v712 = vadd.f32 %v666, %v711
      %713 = vmatmul.bf16.gmra.mxu0 %v687
      %v714 = vpop.f32.mrf.mxu0
      %v715 = vadd.f32 %v666, %v714
      %v716 = vpop.f32.mrf.mxu0
      %v717 = vadd.f32 %v666, %v716
      %718 = vmatmul.bf16.gmra.mxu0 %v690
      %v719 = vpop.f32.mrf.mxu0
      %v720 = vadd.f32 %v666, %v719
      %v721 = vpop.f32.mrf.mxu0
      %v722 = vadd.f32 %v666, %v721
      %723 = vmatmul.bf16.gmra.mxu0 %v693
      %v724 = vpop.f32.mrf.mxu0
      %v725 = vadd.f32 %v666, %v724
      %v726 = vpop.f32.mrf.mxu0
      %727 = vdwg.mxu0
      %728 = vst.msk [vmem:[%s401] sm:$0xff] %vm422, %v705
      %729 = vst.msk [vmem:[%s401 + $0x8] sm:$0xff] %vm422, %v707
      %730 = vst.msk [vmem:[%s401 + $0x10] sm:$0xff] %vm422, %v710
      %731 = vst.msk [vmem:[%s401 + $0x18] sm:$0xff] %vm422, %v712
      %732 = vst.msk [vmem:[%s401 + $0x20] sm:$0xff] %vm422, %v715
      %733 = vst.msk [vmem:[%s401 + $0x28] sm:$0xff] %vm422, %v717
      %734 = vst.msk [vmem:[%s401 + $0x30] sm:$0xff] %vm422, %v720
      %735 = vst.msk [vmem:[%s401 + $0x38] sm:$0xff] %vm422, %v722
      %736 = vst.msk [vmem:[%s401 + $0x40] sm:$0x1] %vm447, %v725
      %v737 = vld [vmem:[%s4] sm:$0xf]
      %v738 = vld [vmem:[%s4 + $0x4] sm:$0xf]
      %v739 = vld [vmem:[%s4 + $0x8] sm:$0xf]
      %v740 = vld [vmem:[%s4 + $0xc] sm:$0xf]
      %v741 = vld [vmem:[%s7] sm:$0x1]
      %v743 = vperm.slane %v741, 0
      %v749 = vunpack.c.l.b16 %v737
      %v750 = vunpack.c.l.b16 %v738
      %v751 = vunpack.c.l.b16 %v739
      %v752 = vunpack.c.l.b16 %v740
      %v753 = vpack.c.b16 %v750, %v749
      %v754 = vpack.c.b16 %v752, %v751
      %757 = vmatpush.bf16.msra.mxu0 0
      %758 = vmatpush.bf16.msra.mxu0 0
      %759 = vmatpush.bf16.msra.mxu0 0
      %760 = vmatpush.bf16.msra.mxu0 0
      %761 = vmatpush.bf16.msra.mxu0 0
      %762 = vmatpush.bf16.msra.mxu0 0
      %763 = vmatpush.bf16.msra.mxu0 %v754
      %764 = vmatpush.bf16.msra.mxu0 %v753
      %765 = vmatmul.bf16.gmra.mxu0 %v681
      %v766 = vpop.f32.mrf.mxu0
      %v767 = vadd.f32 %v743, %v766
      %v768 = vpop.f32.mrf.mxu0
      %v769 = vadd.f32 %v743, %v768
      %770 = vmatmul.bf16.gmra.mxu0 %v684
      %v771 = vpop.f32.mrf.mxu0
      %v772 = vadd.f32 %v743, %v771
      %v773 = vpop.f32.mrf.mxu0
      %v774 = vadd.f32 %v743, %v773
      %775 = vmatmul.bf16.gmra.mxu0 %v687
      %v776 = vpop.f32.mrf.mxu0
      %v777 = vadd.f32 %v743, %v776
      %v778 = vpop.f32.mrf.mxu0
      %v779 = vadd.f32 %v743, %v778
      %780 = vmatmul.bf16.gmra.mxu0 %v690
      %v781 = vpop.f32.mrf.mxu0
      %v782 = vadd.f32 %v743, %v781
      %v783 = vpop.f32.mrf.mxu0
      %v784 = vadd.f32 %v743, %v783
      %785 = vmatmul.bf16.gmra.mxu0 %v693
      %v786 = vpop.f32.mrf.mxu0
      %v787 = vadd.f32 %v743, %v786
      %v788 = vpop.f32.mrf.mxu0
      %789 = vdwg.mxu0
      %790 = vst.msk [vmem:[%s406] sm:$0xff] %vm422, %v767
      %791 = vst.msk [vmem:[%s406 + $0x8] sm:$0xff] %vm422, %v769
      %792 = vst.msk [vmem:[%s406 + $0x10] sm:$0xff] %vm422, %v772
      %793 = vst.msk [vmem:[%s406 + $0x18] sm:$0xff] %vm422, %v774
      %794 = vst.msk [vmem:[%s406 + $0x20] sm:$0xff] %vm422, %v777
      %795 = vst.msk [vmem:[%s406 + $0x28] sm:$0xff] %vm422, %v779
      %796 = vst.msk [vmem:[%s406 + $0x30] sm:$0xff] %vm422, %v782
      %797 = vst.msk [vmem:[%s406 + $0x38] sm:$0xff] %vm422, %v784
      %798 = vst.msk [vmem:[%s406 + $0x40] sm:$0x1] %vm447, %v787
      %v799 = vld [vmem:[%s5] sm:$0xf]
      %v800 = vld [vmem:[%s5 + $0x4] sm:$0xf]
      %v801 = vld [vmem:[%s5 + $0x8] sm:$0xf]
      %v802 = vld [vmem:[%s5 + $0xc] sm:$0xf]
      %v803 = vld [vmem:[%s8] sm:$0x1]
      %v805 = vperm.slane %v803, 0
      %v811 = vunpack.c.l.b16 %v799
      %v812 = vunpack.c.l.b16 %v800
      %v813 = vunpack.c.l.b16 %v801
      %v814 = vunpack.c.l.b16 %v802
      %v815 = vpack.c.b16 %v812, %v811
      %v816 = vpack.c.b16 %v814, %v813
      %819 = vmatpush.bf16.msra.mxu0 0
      %820 = vmatpush.bf16.msra.mxu0 0
      %821 = vmatpush.bf16.msra.mxu0 0
      %822 = vmatpush.bf16.msra.mxu0 0
      %823 = vmatpush.bf16.msra.mxu0 0
      %824 = vmatpush.bf16.msra.mxu0 0
      %825 = vmatpush.bf16.msra.mxu0 %v816
      %826 = vmatpush.bf16.msra.mxu0 %v815
      %827 = vmatmul.bf16.gmra.mxu0 %v681
      %v828 = vpop.f32.mrf.mxu0
      %v829 = vadd.f32 %v805, %v828
      %v830 = vpop.f32.mrf.mxu0
      %v831 = vadd.f32 %v805, %v830
      %832 = vmatmul.bf16.gmra.mxu0 %v684
      %v833 = vpop.f32.mrf.mxu0
      %v834 = vadd.f32 %v805, %v833
      %v835 = vpop.f32.mrf.mxu0
      %v836 = vadd.f32 %v805, %v835
      %837 = vmatmul.bf16.gmra.mxu0 %v687
      %v838 = vpop.f32.mrf.mxu0
      %v839 = vadd.f32 %v805, %v838
      %v840 = vpop.f32.mrf.mxu0
      %v841 = vadd.f32 %v805, %v840
      %842 = vmatmul.bf16.gmra.mxu0 %v690
      %v843 = vpop.f32.mrf.mxu0
      %v844 = vadd.f32 %v805, %v843
      %v845 = vpop.f32.mrf.mxu0
      %v846 = vadd.f32 %v805, %v845
      %847 = vmatmul.bf16.gmra.mxu0 %v693
      %v848 = vpop.f32.mrf.mxu0
      %v849 = vadd.f32 %v805, %v848
      %v850 = vpop.f32.mrf.mxu0
      %851 = vdwg.mxu0
      %852 = vst.msk [vmem:[%s411] sm:$0xff] %vm422, %v829
      %853 = vst.msk [vmem:[%s411 + $0x8] sm:$0xff] %vm422, %v831
      %854 = vst.msk [vmem:[%s411 + $0x10] sm:$0xff] %vm422, %v834
      %855 = vst.msk [vmem:[%s411 + $0x18] sm:$0xff] %vm422, %v836
      %856 = vst.msk [vmem:[%s411 + $0x20] sm:$0xff] %vm422, %v839
      %857 = vst.msk [vmem:[%s411 + $0x28] sm:$0xff] %vm422, %v841
      %858 = vst.msk [vmem:[%s411 + $0x30] sm:$0xff] %vm422, %v844
      %859 = vst.msk [vmem:[%s411 + $0x38] sm:$0xff] %vm422, %v846
      %860 = vst.msk [vmem:[%s411 + $0x40] sm:$0x1] %vm447, %v849
      %p861 = scmp.lt.s32.totalorder %s23, 1
      %s862 = scalar_select %p861, %s23, 1
      %s863 = smul.addr %s862, 9
      %s864 = smul.addr %s863, 8
      %s865 = scalar_lea.vmem %s9, %s864
      %p866 = scmp.lt.s32.totalorder %s23, 1
      %s867 = scalar_select %p866, %s23, 1
      %s868 = smul.addr %s867, 9
      %s869 = smul.addr %s868, 8
      %s870 = scalar_lea.vmem %s10, %s869
      %p871 = scmp.lt.s32.totalorder %s23, 1
      %s872 = scalar_select %p871, %s23, 1
      %s873 = smul.addr %s872, 9
      %s874 = smul.addr %s873, 8
      %s875 = scalar_lea.vmem %s11, %s874
      // Predicated region
      $region57: #{tpu_custom_call.1} parent=55 // pred_check
        %p876 = pneg %p235
      $region58: #{tpu_custom_call.1} parent=55 // pred_check_branch
        %878 = sbr.rel (%p876) target = $region60
      $region59: #{tpu_custom_call.1} parent=55 // pred_region
        _
      $region60: #{tpu_custom_call.1} parent=55 // pred_fallthru
        _
      // Predicated region
      $region61: #{tpu_custom_call.1} parent=55 // pred_check
        %p879 = pneg %p261
      $region62: #{tpu_custom_call.1} parent=55 // pred_check_branch
        %881 = sbr.rel (%p879) target = $region64
      $region63: #{tpu_custom_call.1} parent=55 // pred_region
        _
      $region64: #{tpu_custom_call.1} parent=55 // pred_fallthru
        _
      // Predicated region
      $region65: #{tpu_custom_call.1} parent=55 // pred_check
        %p882 = pneg %p287
      $region66: #{tpu_custom_call.1} parent=55 // pred_check_branch
        %884 = sbr.rel (%p882) target = $region68
      $region67: #{tpu_custom_call.1} parent=55 // pred_region
        _
      $region68: #{tpu_custom_call.1} parent=55 // pred_fallthru
        _
    $region56: #{tpu_custom_call.1} parent=5 // pred_fallthru
      _
    %p885 = scmp.le.s32.totalorder 2, %s18
    // Predicated region
    $region69: #{tpu_custom_call.1} parent=5 // pred_check
      %p886 = pneg %p885
    $region70: #{tpu_custom_call.1} parent=5 // pred_check_branch
      %888 = sbr.rel (%p886) target = $region72
    $region71: #{tpu_custom_call.1} parent=5 // pred_region
      %s889 = ssub.s32 %s18, 2
      // Predicated region
      $region73: #{tpu_custom_call.1} parent=71 // pred_check
        %p890 = pneg %p241
      $region74: #{tpu_custom_call.1} parent=71 // pred_check_branch
        %892 = sbr.rel (%p890) target = $region76
      $region75: #{tpu_custom_call.1} parent=71 // pred_region
        %p893 = scmp.lt.s32.totalorder %s24, 1
        %s894 = scalar_select %p893, %s24, 1
        %s895 = smul.addr %s894, 9
        %s896 = smul.addr %s895, 8
        %s897 = scalar_lea.vmem %s9, %s896
      $region76: #{tpu_custom_call.1} parent=71 // pred_fallthru
        _
      // Predicated region
      $region77: #{tpu_custom_call.1} parent=71 // pred_check
        %p898 = pneg %p267
      $region78: #{tpu_custom_call.1} parent=71 // pred_check_branch
        %900 = sbr.rel (%p898) target = $region80
      $region79: #{tpu_custom_call.1} parent=71 // pred_region
        %p901 = scmp.lt.s32.totalorder %s24, 1
        %s902 = scalar_select %p901, %s24, 1
        %s903 = smul.addr %s902, 9
        %s904 = smul.addr %s903, 8
        %s905 = scalar_lea.vmem %s10, %s904
      $region80: #{tpu_custom_call.1} parent=71 // pred_fallthru
        _
      // Predicated region
      $region81: #{tpu_custom_call.1} parent=71 // pred_check
        %p906 = pneg %p293
      $region82: #{tpu_custom_call.1} parent=71 // pred_check_branch
        %908 = sbr.rel (%p906) target = $region84
      $region83: #{tpu_custom_call.1} parent=71 // pred_region
        %p909 = scmp.lt.s32.totalorder %s24, 1
        %s910 = scalar_select %p909, %s24, 1
        %s911 = smul.addr %s910, 9
        %s912 = smul.addr %s911, 8
        %s913 = scalar_lea.vmem %s11, %s912
      $region84: #{tpu_custom_call.1} parent=71 // pred_fallthru
        _
    $region72: #{tpu_custom_call.1} parent=5 // pred_fallthru
      _
  $region6: #{tpu_custom_call.1} parent=0 // loop_footer
    %s22 = sadd.s32 1, %s18
  $region7: #{tpu_custom_call.1} parent=0 // loop_footer_branch
    %17 = sbr.rel target = $region3
  $region8: #{tpu_custom_call.1} parent=0 // loop_exit
    _

</llo_original>
